<compile_context>
chip_gen: v5e
topology: v5e:2x2
jax: 0.10.0
libtpu: 0.0.40
codegen_flags: <defaults>
</compile_context>

<pallas_src>
import math
import functools

import jax
import jax.numpy as jnp
from jax.experimental import pallas as pl
from jax.experimental.pallas import tpu as pltpu


# ----------------------------- Pallas kernels ------------------------------

def _qkv_proj_kernel(q_ref, k_ref, v_ref, w_ref, b_ref,
                     qp_ref, kp_ref, vp_ref):
    """Fused Q/K/V projections for one row tile.

    q/k/v: (tm, Din) row tiles; w: (3, Din, E) resident stacked (pre-transposed)
    weights; b: (3, E) stacked biases.  Outputs: (tm, E) each.
    """
    qp_ref[...] = (jnp.dot(q_ref[...], w_ref[0],
                           preferred_element_type=jnp.float32)
                   + b_ref[0:1, :]).astype(qp_ref.dtype)
    kp_ref[...] = (jnp.dot(k_ref[...], w_ref[1],
                           preferred_element_type=jnp.float32)
                   + b_ref[1:2, :]).astype(kp_ref.dtype)
    vp_ref[...] = (jnp.dot(v_ref[...], w_ref[2],
                           preferred_element_type=jnp.float32)
                   + b_ref[2:3, :]).astype(vp_ref.dtype)


def _attn_head_kernel(q_ref, k_ref, v_ref, wo_ref, bo_ref, o_ref, a_ref, *,
                      scale):
    """Per-(batch, head) scaled-dot-product attention + fused head-merge /
    output projection.

    Grid = (B, H); h = program_id(1) is the accumulation ("arbitrary") axis.
    q/k/v: (L, Dh) for the current (b, h); wo: (Dh, E) slice of Wo^T for head
    h; bo: (1, E).  Outputs: o (Lq, E) resident across h (accumulator),
    a (Lq, Lk) per-(b, h) attention weights.
    """
    h = pl.program_id(1)

    # Fold 1/sqrt(Dh) into q (cheaper than scaling the (Lq, Lk) score matrix).
    q = q_ref[...] * scale                                        # (Lq, Dh) f32
    # q @ k^T with no explicit transpose.
    s = jax.lax.dot_general(q, k_ref[...], (((1,), (1,)), ((), ())),
                            preferred_element_type=jnp.float32)   # (Lq, Lk)
    s = s - jnp.max(s, axis=-1, keepdims=True)                    # stable softmax
    ex = jnp.exp(s)
    # Divide -> EUP reciprocal + VALU multiply.
    p = ex * pl.reciprocal(jnp.sum(ex, axis=-1, keepdims=True), approx=False)
    a_ref[...] = p.astype(a_ref.dtype)

    vals = jnp.dot(p, v_ref[...], preferred_element_type=jnp.float32)  # (Lq, Dh)
    # Head-merge + output projection: this head's contribution to o[b].
    contrib = jnp.dot(vals, wo_ref[...],
                      preferred_element_type=jnp.float32)               # (Lq, E)

    @pl.when(h == 0)
    def _():
        o_ref[...] = (contrib + bo_ref[...]).astype(o_ref.dtype)

    @pl.when(h != 0)
    def _():
        o_ref[...] = o_ref[...] + contrib.astype(o_ref.dtype)


# --------------------------- parameter packing ------------------------------

def pack_params(params, num_heads):
    """One-time weight packing (done outside the hot forward path)."""
    wq, bq, wk, bk, wv, bv, wo, bo = params
    E = wq.shape[0]
    dh = E // num_heads
    w_qkv = jnp.stack([wq.T, wk.T, wv.T], axis=0)      # (3, Din, E)
    b_qkv = jnp.stack([bq, bk, bv], axis=0)            # (3, E)
    wo3 = wo.T.reshape(num_heads, dh, E)               # (H, Dh, E) = Wo^T per head
    bo2 = bo.reshape(1, E)
    return w_qkv, b_qkv, wo3, bo2


def _pick_row_tile(m):
    for t in (512, 256, 128, 64, 32, 16, 8):
        if m % t == 0:
            return t
    return m


# --------------------------- module forward (glue) --------------------------

def multihead_attention_forward(q, k, v, packed, num_heads):
    w_qkv, b_qkv, wo3, bo2 = packed
    B, Lq, Din = q.shape
    _, Lk, _ = k.shape
    _, Lv, _ = v.shape
    E = w_qkv.shape[2]
    Dh = E // num_heads
    H = num_heads
    # TODO(synk): unequal q/k/v sequence lengths would need separate
    # projection grids; the module is exercised with equal lengths.
    assert Lq == Lk == Lv, "fused QKV projection path assumes equal lengths"
    M = B * Lq
    tm = _pick_row_tile(M)

    # ---- kernel 1: fused Q/K/V projections, row-tiled & pipelined ----------
    qp, kp, vp = pl.pallas_call(
        _qkv_proj_kernel,
        grid=(M // tm,),
        out_shape=(
            jax.ShapeDtypeStruct((M, E), jnp.float32),
            jax.ShapeDtypeStruct((M, E), jnp.float32),
            jax.ShapeDtypeStruct((M, E), jnp.float32),
        ),
        in_specs=[
            pl.BlockSpec((tm, Din), lambda i: (i, 0)),
            pl.BlockSpec((tm, Din), lambda i: (i, 0)),
            pl.BlockSpec((tm, Din), lambda i: (i, 0)),
            pl.BlockSpec((3, Din, E), lambda i: (0, 0, 0)),   # resident weights
            pl.BlockSpec((3, E), lambda i: (0, 0)),           # resident biases
        ],
        out_specs=(
            pl.BlockSpec((tm, E), lambda i: (i, 0)),
            pl.BlockSpec((tm, E), lambda i: (i, 0)),
            pl.BlockSpec((tm, E), lambda i: (i, 0)),
        ),
        compiler_params=pltpu.CompilerParams(
            dimension_semantics=("parallel",),
            vmem_limit_bytes=64 * 1024 * 1024),
    )(q.reshape(M, Din), k.reshape(M, Din), v.reshape(M, Din), w_qkv, b_qkv)

    # Module's non-standard reshape (B, L, E) -> (B, H, L, Dh): identical to a
    # row-major reshape of (B*L, E) — pure metadata in XLA, no data movement.
    qh = qp.reshape(B, H, Lq, Dh)
    kh = kp.reshape(B, H, Lk, Dh)
    vh = vp.reshape(B, H, Lv, Dh)

    # ---- kernel 2: per-(b, h) attention + head-merge + out proj ------------
    scale = 1.0 / math.sqrt(Dh)
    kernel2 = functools.partial(_attn_head_kernel, scale=scale)
    o, attn = pl.pallas_call(
        kernel2,
        grid=(B, H),
        out_shape=(
            jax.ShapeDtypeStruct((B, Lq, E), jnp.float32),
            jax.ShapeDtypeStruct((B, H, Lq, Lk), jnp.float32),
        ),
        in_specs=[
            pl.BlockSpec((None, None, Lq, Dh), lambda b, h: (b, h, 0, 0)),
            pl.BlockSpec((None, None, Lk, Dh), lambda b, h: (b, h, 0, 0)),
            pl.BlockSpec((None, None, Lv, Dh), lambda b, h: (b, h, 0, 0)),
            pl.BlockSpec((None, Dh, E), lambda b, h: (h, 0, 0)),
            pl.BlockSpec((1, E), lambda b, h: (0, 0)),
        ],
        out_specs=(
            # o block constant across h -> resident accumulator across heads.
            pl.BlockSpec((None, Lq, E), lambda b, h: (b, 0, 0)),
            pl.BlockSpec((None, None, Lq, Lk), lambda b, h: (b, h, 0, 0)),
        ),
        compiler_params=pltpu.CompilerParams(
            dimension_semantics=("parallel", "arbitrary"),
            vmem_limit_bytes=64 * 1024 * 1024),
    )(qh, kh, vh, wo3, bo2)

    return o, attn


# ------------------------------ reference (JAX) ------------------------------

def reference_forward(q, k, v, params, num_heads):
    wq, bq, wk, bk, wv, bv, wo, bo = params
    B, Lq, _ = q.shape
    E = wq.shape[0]
    Dh = E // num_heads
    qp = (q @ wq.T + bq).reshape(B, num_heads, Lq, Dh)
    kp = (k @ wk.T + bk).reshape(B, num_heads, k.shape[1], Dh)
    vp = (v @ wv.T + bv).reshape(B, num_heads, v.shape[1], Dh)
    s = jnp.einsum("bhqd,bhkd->bhqk", qp, kp) / math.sqrt(Dh)
    a = jax.nn.softmax(s, axis=-1)
    vals = jnp.einsum("bhqk,bhkd->bhqd", a, vp)
    vals = jnp.transpose(vals, (0, 2, 1, 3)).reshape(B, Lq, E)
    o = vals @ wo.T + bo
    return o, a


# ------------------------------ parameter init ------------------------------

def xavier_uniform(key, out_dim, in_dim):
    bound = math.sqrt(6.0 / (in_dim + out_dim))
    return jax.random.uniform(key, (out_dim, in_dim), jnp.float32, -bound, bound)


def init_params(key, input_dim, embed_dim):
    ks = jax.random.split(key, 4)
    wq = xavier_uniform(ks[0], embed_dim, input_dim)
    wk = xavier_uniform(ks[1], embed_dim, input_dim)
    wv = xavier_uniform(ks[2], embed_dim, input_dim)
    wo = xavier_uniform(ks[3], embed_dim, embed_dim)
    zeros_e = jnp.zeros((embed_dim,), jnp.float32)   # PyTorch module fills biases with 0
    return (wq, zeros_e, wk, zeros_e, wv, zeros_e, wo, zeros_e)


# ---------------------------------- main ------------------------------------

if __name__ == "__main__":
    B, L, input_dim, embed_dim, num_heads = 2, 8, 16, 32, 4

    key = jax.random.PRNGKey(0)
    kq, kk, kv, kp = jax.random.split(key, 4)
    q = jax.random.normal(kq, (B, L, input_dim), jnp.float32)
    k = jax.random.normal(kk, (B, L, input_dim), jnp.float32)
    v = jax.random.normal(kv, (B, L, input_dim), jnp.float32)
    params = init_params(kp, input_dim, embed_dim)

    # One-time weight packing (kept out of the per-forward hot path).
    packed = jax.tree_util.tree_map(jax.block_until_ready,
                                    pack_params(params, num_heads))

    forward = jax.jit(multihead_attention_forward, static_argnums=(4,))
    o, attn = forward(q, k, v, packed, num_heads)
    o = jax.block_until_ready(o)
    attn = jax.block_until_ready(attn)

    o_ref, attn_ref = reference_forward(q, k, v, params, num_heads)
    assert o.shape == (B, L, embed_dim) and attn.shape == (B, num_heads, L, L)
    assert jnp.allclose(o, o_ref, rtol=1e-4, atol=1e-4), "output mismatch"
    assert jnp.allclose(attn, attn_ref, rtol=1e-4, atol=1e-4), "attention mismatch"

    print("KERNEL_OK")
</pallas_src>

<mosaic_0001>
module attributes {stable_mosaic.version = 11 : i64} {
  func.func @_attn_head_kernel(%arg0: i32, %arg1: i32, %arg2: memref<1x1x8x8xf32, #tpu.memory_space<vmem>>, %arg3: memref<1x1x8x8xf32, #tpu.memory_space<vmem>>, %arg4: memref<1x1x8x8xf32, #tpu.memory_space<vmem>>, %arg5: memref<1x8x32xf32, #tpu.memory_space<vmem>>, %arg6: memref<1x32xf32, #tpu.memory_space<vmem>>, %arg7: memref<1x8x32xf32, #tpu.memory_space<vmem>>, %arg8: memref<1x1x8x8xf32, #tpu.memory_space<vmem>>) attributes {dimension_semantics = [#tpu.dimension_semantics<parallel>, #tpu.dimension_semantics<arbitrary>], iteration_bounds = array<i64: 2, 4>, scalar_prefetch = 0 : i64, scratch_operands = 0 : i64, tpu.core_type = #tpu.core_type<tc>, window_params = [{transform_indices = @transform_0, window_bounds = array<i64: 1, 1, 8, 8>}, {transform_indices = @transform_1, window_bounds = array<i64: 1, 1, 8, 8>}, {transform_indices = @transform_2, window_bounds = array<i64: 1, 1, 8, 8>}, {transform_indices = @transform_3, window_bounds = array<i64: 1, 8, 32>}, {pipeline_mode = #tpu.pipeline_mode<synchronous>, transform_indices = @transform_4, window_bounds = array<i64: 1, 32>}, {transform_indices = @transform_5, window_bounds = array<i64: 1, 8, 32>}, {transform_indices = @transform_6, window_bounds = array<i64: 1, 1, 8, 8>}]} {
    %c0 = arith.constant 0 : index
    %c0_0 = arith.constant 0 : index
    %c0_1 = arith.constant 0 : index
    %c0_2 = arith.constant 0 : index
    %0 = vector.load %arg2[%c0, %c0_0, %c0_1, %c0_2] : memref<1x1x8x8xf32, #tpu.memory_space<vmem>>, vector<1x1x8x8xf32>
    %1 = vector.shape_cast %0 : vector<1x1x8x8xf32> to vector<8x8xf32>
    %cst = arith.constant 0.353553385 : f32
    %2 = vector.broadcast %cst : f32 to vector<8x8xf32>
    %3 = arith.mulf %1, %2 : vector<8x8xf32>
    %c0_3 = arith.constant 0 : index
    %c0_4 = arith.constant 0 : index
    %c0_5 = arith.constant 0 : index
    %c0_6 = arith.constant 0 : index
    %4 = vector.load %arg3[%c0_3, %c0_4, %c0_5, %c0_6] : memref<1x1x8x8xf32, #tpu.memory_space<vmem>>, vector<1x1x8x8xf32>
    %5 = vector.shape_cast %4 : vector<1x1x8x8xf32> to vector<8x8xf32>
    %cst_7 = arith.constant dense<0.000000e+00> : vector<8x8xf32>
    %6 = tpu.matmul %3, %5, %cst_7 {dimension_numbers = #tpu.dot_dimension_numbers<[1], [1], [0], [0], [0, 0, 1, 0], [], []>} : vector<8x8xf32>, vector<8x8xf32>, vector<8x8xf32> -> vector<8x8xf32>
    %cst_8 = arith.constant dense<0xFF800000> : vector<8xf32>
    %7 = vector.multi_reduction <maximumf>, %6, %cst_8 [1] : vector<8x8xf32> to vector<8xf32>
    %8 = vector.shape_cast %7 : vector<8xf32> to vector<8x1xf32>
    %9 = vector.broadcast %8 : vector<8x1xf32> to vector<8x8xf32>
    %10 = arith.subf %6, %9 : vector<8x8xf32>
    %11 = math.exp %10 : vector<8x8xf32>
    %cst_9 = arith.constant dense<0.000000e+00> : vector<8xf32>
    %12 = vector.multi_reduction <add>, %11, %cst_9 [1] : vector<8x8xf32> to vector<8xf32>
    %13 = vector.shape_cast %12 : vector<8xf32> to vector<8x1xf32>
    %14 = tpu.reciprocal %13 : vector<8x1xf32> -> vector<8x1xf32>
    %15 = vector.broadcast %14 : vector<8x1xf32> to vector<8x8xf32>
    %16 = arith.mulf %11, %15 : vector<8x8xf32>
    %c0_10 = arith.constant 0 : index
    %c0_11 = arith.constant 0 : index
    %c0_12 = arith.constant 0 : index
    %c0_13 = arith.constant 0 : index
    %17 = vector.load %arg8[%c0_10, %c0_11, %c0_12, %c0_13] : memref<1x1x8x8xf32, #tpu.memory_space<vmem>>, vector<1x1x8x8xf32>
    %18 = vector.shape_cast %17 : vector<1x1x8x8xf32> to vector<8x8xf32>
    %19 = vector.shape_cast %16 : vector<8x8xf32> to vector<1x1x8x8xf32>
    tpu.vector_store %arg8[%c0_10, %c0_11, %c0_12, %c0_13], %19 {strides = array<i32>} : memref<1x1x8x8xf32, #tpu.memory_space<vmem>>, vector<1x1x8x8xf32>,
    %c0_14 = arith.constant 0 : index
    %c0_15 = arith.constant 0 : index
    %c0_16 = arith.constant 0 : index
    %c0_17 = arith.constant 0 : index
    %20 = vector.load %arg4[%c0_14, %c0_15, %c0_16, %c0_17] : memref<1x1x8x8xf32, #tpu.memory_space<vmem>>, vector<1x1x8x8xf32>
    %21 = vector.shape_cast %20 : vector<1x1x8x8xf32> to vector<8x8xf32>
    %cst_18 = arith.constant dense<0.000000e+00> : vector<8x8xf32>
    %22 = tpu.matmul %16, %21, %cst_18 {dimension_numbers = #tpu.dot_dimension_numbers<[1], [0], [0], [1], [0, 0, 1, 1], [], []>} : vector<8x8xf32>, vector<8x8xf32>, vector<8x8xf32> -> vector<8x8xf32>
    %c0_19 = arith.constant 0 : index
    %c0_20 = arith.constant 0 : index
    %c0_21 = arith.constant 0 : index
    %23 = vector.load %arg5[%c0_19, %c0_20, %c0_21] : memref<1x8x32xf32, #tpu.memory_space<vmem>>, vector<1x8x32xf32>
    %24 = vector.shape_cast %23 : vector<1x8x32xf32> to vector<8x32xf32>
    %cst_22 = arith.constant dense<0.000000e+00> : vector<8x32xf32>
    %25 = tpu.matmul %22, %24, %cst_22 {dimension_numbers = #tpu.dot_dimension_numbers<[1], [0], [0], [1], [0, 0, 1, 1], [], []>} : vector<8x8xf32>, vector<8x32xf32>, vector<8x32xf32> -> vector<8x32xf32>
    %c0_i32 = arith.constant 0 : i32
    %26 = arith.cmpi eq, %arg1, %c0_i32 : i32
    %27 = arith.extui %26 : i1 to i32
    %c0_i32_23 = arith.constant 0 : i32
    %28 = arith.cmpi ne, %27, %c0_i32_23 : i32
    scf.if %28 {
      %c0_26 = arith.constant 0 : index
      %c0_27 = arith.constant 0 : index
      %32 = vector.load %arg6[%c0_26, %c0_27] : memref<1x32xf32, #tpu.memory_space<vmem>>, vector<1x32xf32>
      %33 = vector.broadcast %32 : vector<1x32xf32> to vector<8x32xf32>
      %34 = arith.addf %25, %33 : vector<8x32xf32>
      %c0_28 = arith.constant 0 : index
      %c0_29 = arith.constant 0 : index
      %c0_30 = arith.constant 0 : index
      %35 = vector.load %arg7[%c0_28, %c0_29, %c0_30] : memref<1x8x32xf32, #tpu.memory_space<vmem>>, vector<1x8x32xf32>
      %36 = vector.shape_cast %35 : vector<1x8x32xf32> to vector<8x32xf32>
      %37 = vector.shape_cast %34 : vector<8x32xf32> to vector<1x8x32xf32>
      tpu.vector_store %arg7[%c0_28, %c0_29, %c0_30], %37 {strides = array<i32>} : memref<1x8x32xf32, #tpu.memory_space<vmem>>, vector<1x8x32xf32>,
    } else {
    }
    %c0_i32_24 = arith.constant 0 : i32
    %29 = arith.cmpi ne, %arg1, %c0_i32_24 : i32
    %30 = arith.extui %29 : i1 to i32
    %c0_i32_25 = arith.constant 0 : i32
    %31 = arith.cmpi ne, %30, %c0_i32_25 : i32
    scf.if %31 {
      %c0_26 = arith.constant 0 : index
      %c0_27 = arith.constant 0 : index
      %c0_28 = arith.constant 0 : index
      %32 = vector.load %arg7[%c0_26, %c0_27, %c0_28] : memref<1x8x32xf32, #tpu.memory_space<vmem>>, vector<1x8x32xf32>
      %33 = vector.shape_cast %32 : vector<1x8x32xf32> to vector<8x32xf32>
      %34 = arith.addf %33, %25 : vector<8x32xf32>
      %c0_29 = arith.constant 0 : index
      %c0_30 = arith.constant 0 : index
      %c0_31 = arith.constant 0 : index
      %35 = vector.load %arg7[%c0_29, %c0_30, %c0_31] : memref<1x8x32xf32, #tpu.memory_space<vmem>>, vector<1x8x32xf32>
      %36 = vector.shape_cast %35 : vector<1x8x32xf32> to vector<8x32xf32>
      %37 = vector.shape_cast %34 : vector<8x32xf32> to vector<1x8x32xf32>
      tpu.vector_store %arg7[%c0_29, %c0_30, %c0_31], %37 {strides = array<i32>} : memref<1x8x32xf32, #tpu.memory_space<vmem>>, vector<1x8x32xf32>,
    } else {
    }
    return
  }
  func.func @transform_0(%arg0: i32, %arg1: i32) -> (i32, i32, i32, i32) {
    %c0_i32 = arith.constant 0 : i32
    %c0_i32_0 = arith.constant 0 : i32
    %c0_i32_1 = arith.constant 0 : i32
    return %arg0, %arg1, %c0_i32, %c0_i32_0 : i32, i32, i32, i32
  }
  func.func @transform_1(%arg0: i32, %arg1: i32) -> (i32, i32, i32, i32) {
    %c0_i32 = arith.constant 0 : i32
    %c0_i32_0 = arith.constant 0 : i32
    %c0_i32_1 = arith.constant 0 : i32
    return %arg0, %arg1, %c0_i32, %c0_i32_0 : i32, i32, i32, i32
  }
  func.func @transform_2(%arg0: i32, %arg1: i32) -> (i32, i32, i32, i32) {
    %c0_i32 = arith.constant 0 : i32
    %c0_i32_0 = arith.constant 0 : i32
    %c0_i32_1 = arith.constant 0 : i32
    return %arg0, %arg1, %c0_i32, %c0_i32_0 : i32, i32, i32, i32
  }
  func.func @transform_3(%arg0: i32, %arg1: i32) -> (i32, i32, i32) {
    %c0_i32 = arith.constant 0 : i32
    %c0_i32_0 = arith.constant 0 : i32
    %c0_i32_1 = arith.constant 0 : i32
    return %arg1, %c0_i32, %c0_i32_0 : i32, i32, i32
  }
  func.func @transform_4(%arg0: i32, %arg1: i32) -> (i32, i32) {
    %c0_i32 = arith.constant 0 : i32
    %c0_i32_0 = arith.constant 0 : i32
    %c0_i32_1 = arith.constant 0 : i32
    return %c0_i32, %c0_i32_0 : i32, i32
  }
  func.func @transform_5(%arg0: i32, %arg1: i32) -> (i32, i32, i32) {
    %c0_i32 = arith.constant 0 : i32
    %c0_i32_0 = arith.constant 0 : i32
    %c0_i32_1 = arith.constant 0 : i32
    return %arg0, %c0_i32, %c0_i32_0 : i32, i32, i32
  }
  func.func @transform_6(%arg0: i32, %arg1: i32) -> (i32, i32, i32, i32) {
    %c0_i32 = arith.constant 0 : i32
    %c0_i32_0 = arith.constant 0 : i32
    %c0_i32_1 = arith.constant 0 : i32
    return %arg0, %arg1, %c0_i32, %c0_i32_0 : i32, i32, i32, i32
  }
}

module attributes {stable_mosaic.version = 11 : i64} {
  func.func @_qkv_proj_kernel(%arg0: i32, %arg1: memref<16x16xf32, #tpu.memory_space<vmem>>, %arg2: memref<16x16xf32, #tpu.memory_space<vmem>>, %arg3: memref<16x16xf32, #tpu.memory_space<vmem>>, %arg4: memref<3x16x32xf32, #tpu.memory_space<vmem>>, %arg5: memref<3x32xf32, #tpu.memory_space<vmem>>, %arg6: memref<16x32xf32, #tpu.memory_space<vmem>>, %arg7: memref<16x32xf32, #tpu.memory_space<vmem>>, %arg8: memref<16x32xf32, #tpu.memory_space<vmem>>) attributes {dimension_semantics = [#tpu.dimension_semantics<parallel>], iteration_bounds = array<i64: 1>, scalar_prefetch = 0 : i64, scratch_operands = 0 : i64, tpu.core_type = #tpu.core_type<tc>, window_params = [{transform_indices = @transform_0, window_bounds = array<i64: 16, 16>}, {transform_indices = @transform_1, window_bounds = array<i64: 16, 16>}, {transform_indices = @transform_2, window_bounds = array<i64: 16, 16>}, {pipeline_mode = #tpu.pipeline_mode<synchronous>, transform_indices = @transform_3, window_bounds = array<i64: 3, 16, 32>}, {pipeline_mode = #tpu.pipeline_mode<synchronous>, transform_indices = @transform_4, window_bounds = array<i64: 3, 32>}, {transform_indices = @transform_5, window_bounds = array<i64: 16, 32>}, {transform_indices = @transform_6, window_bounds = array<i64: 16, 32>}, {transform_indices = @transform_7, window_bounds = array<i64: 16, 32>}]} {
    %c0 = arith.constant 0 : index
    %c0_0 = arith.constant 0 : index
    %0 = vector.load %arg1[%c0, %c0_0] : memref<16x16xf32, #tpu.memory_space<vmem>>, vector<16x16xf32>
    %c0_1 = arith.constant 0 : index
    %c0_2 = arith.constant 0 : index
    %c0_3 = arith.constant 0 : index
    %1 = vector.load %arg4[%c0_1, %c0_2, %c0_3] : memref<3x16x32xf32, #tpu.memory_space<vmem>>, vector<1x16x32xf32>
    %2 = vector.shape_cast %1 : vector<1x16x32xf32> to vector<16x32xf32>
    %cst = arith.constant dense<0.000000e+00> : vector<16x32xf32>
    %3 = tpu.matmul %0, %2, %cst {dimension_numbers = #tpu.dot_dimension_numbers<[1], [0], [0], [1], [0, 0, 1, 1], [], []>} : vector<16x16xf32>, vector<16x32xf32>, vector<16x32xf32> -> vector<16x32xf32>
    %c0_4 = arith.constant 0 : index
    %c0_5 = arith.constant 0 : index
    %4 = vector.load %arg5[%c0_4, %c0_5] : memref<3x32xf32, #tpu.memory_space<vmem>>, vector<1x32xf32>
    %5 = vector.broadcast %4 : vector<1x32xf32> to vector<16x32xf32>
    %6 = arith.addf %3, %5 : vector<16x32xf32>
    %c0_6 = arith.constant 0 : index
    %c0_7 = arith.constant 0 : index
    %7 = vector.load %arg6[%c0_6, %c0_7] : memref<16x32xf32, #tpu.memory_space<vmem>>, vector<16x32xf32>
    tpu.vector_store %arg6[%c0_6, %c0_7], %6 {strides = array<i32>} : memref<16x32xf32, #tpu.memory_space<vmem>>, vector<16x32xf32>,
    %c0_8 = arith.constant 0 : index
    %c0_9 = arith.constant 0 : index
    %8 = vector.load %arg2[%c0_8, %c0_9] : memref<16x16xf32, #tpu.memory_space<vmem>>, vector<16x16xf32>
    %c1 = arith.constant 1 : index
    %c0_10 = arith.constant 0 : index
    %c0_11 = arith.constant 0 : index
    %9 = vector.load %arg4[%c1, %c0_10, %c0_11] : memref<3x16x32xf32, #tpu.memory_space<vmem>>, vector<1x16x32xf32>
    %10 = vector.shape_cast %9 : vector<1x16x32xf32> to vector<16x32xf32>
    %cst_12 = arith.constant dense<0.000000e+00> : vector<16x32xf32>
    %11 = tpu.matmul %8, %10, %cst_12 {dimension_numbers = #tpu.dot_dimension_numbers<[1], [0], [0], [1], [0, 0, 1, 1], [], []>} : vector<16x16xf32>, vector<16x32xf32>, vector<16x32xf32> -> vector<16x32xf32>
    %c1_13 = arith.constant 1 : index
    %c0_14 = arith.constant 0 : index
    %12 = vector.load %arg5[%c1_13, %c0_14] : memref<3x32xf32, #tpu.memory_space<vmem>>, vector<1x32xf32>
    %13 = vector.broadcast %12 : vector<1x32xf32> to vector<16x32xf32>
    %14 = arith.addf %11, %13 : vector<16x32xf32>
    %c0_15 = arith.constant 0 : index
    %c0_16 = arith.constant 0 : index
    %15 = vector.load %arg7[%c0_15, %c0_16] : memref<16x32xf32, #tpu.memory_space<vmem>>, vector<16x32xf32>
    tpu.vector_store %arg7[%c0_15, %c0_16], %14 {strides = array<i32>} : memref<16x32xf32, #tpu.memory_space<vmem>>, vector<16x32xf32>,
    %c0_17 = arith.constant 0 : index
    %c0_18 = arith.constant 0 : index
    %16 = vector.load %arg3[%c0_17, %c0_18] : memref<16x16xf32, #tpu.memory_space<vmem>>, vector<16x16xf32>
    %c2 = arith.constant 2 : index
    %c0_19 = arith.constant 0 : index
    %c0_20 = arith.constant 0 : index
    %17 = vector.load %arg4[%c2, %c0_19, %c0_20] : memref<3x16x32xf32, #tpu.memory_space<vmem>>, vector<1x16x32xf32>
    %18 = vector.shape_cast %17 : vector<1x16x32xf32> to vector<16x32xf32>
    %cst_21 = arith.constant dense<0.000000e+00> : vector<16x32xf32>
    %19 = tpu.matmul %16, %18, %cst_21 {dimension_numbers = #tpu.dot_dimension_numbers<[1], [0], [0], [1], [0, 0, 1, 1], [], []>} : vector<16x16xf32>, vector<16x32xf32>, vector<16x32xf32> -> vector<16x32xf32>
    %c2_22 = arith.constant 2 : index
    %c0_23 = arith.constant 0 : index
    %20 = vector.load %arg5[%c2_22, %c0_23] : memref<3x32xf32, #tpu.memory_space<vmem>>, vector<1x32xf32>
    %21 = vector.broadcast %20 : vector<1x32xf32> to vector<16x32xf32>
    %22 = arith.addf %19, %21 : vector<16x32xf32>
    %c0_24 = arith.constant 0 : index
    %c0_25 = arith.constant 0 : index
    %23 = vector.load %arg8[%c0_24, %c0_25] : memref<16x32xf32, #tpu.memory_space<vmem>>, vector<16x32xf32>
    tpu.vector_store %arg8[%c0_24, %c0_25], %22 {strides = array<i32>} : memref<16x32xf32, #tpu.memory_space<vmem>>, vector<16x32xf32>,
    return
  }
  func.func @transform_0(%arg0: i32) -> (i32, i32) {
    %c0_i32 = arith.constant 0 : i32
    %c0_i32_0 = arith.constant 0 : i32
    return %arg0, %c0_i32 : i32, i32
  }
  func.func @transform_1(%arg0: i32) -> (i32, i32) {
    %c0_i32 = arith.constant 0 : i32
    %c0_i32_0 = arith.constant 0 : i32
    return %arg0, %c0_i32 : i32, i32
  }
  func.func @transform_2(%arg0: i32) -> (i32, i32) {
    %c0_i32 = arith.constant 0 : i32
    %c0_i32_0 = arith.constant 0 : i32
    return %arg0, %c0_i32 : i32, i32
  }
  func.func @transform_3(%arg0: i32) -> (i32, i32, i32) {
    %c0_i32 = arith.constant 0 : i32
    %c0_i32_0 = arith.constant 0 : i32
    %c0_i32_1 = arith.constant 0 : i32
    %c0_i32_2 = arith.constant 0 : i32
    return %c0_i32, %c0_i32_0, %c0_i32_1 : i32, i32, i32
  }
  func.func @transform_4(%arg0: i32) -> (i32, i32) {
    %c0_i32 = arith.constant 0 : i32
    %c0_i32_0 = arith.constant 0 : i32
    %c0_i32_1 = arith.constant 0 : i32
    return %c0_i32, %c0_i32_0 : i32, i32
  }
  func.func @transform_5(%arg0: i32) -> (i32, i32) {
    %c0_i32 = arith.constant 0 : i32
    %c0_i32_0 = arith.constant 0 : i32
    return %arg0, %c0_i32 : i32, i32
  }
  func.func @transform_6(%arg0: i32) -> (i32, i32) {
    %c0_i32 = arith.constant 0 : i32
    %c0_i32_0 = arith.constant 0 : i32
    return %arg0, %c0_i32 : i32, i32
  }
  func.func @transform_7(%arg0: i32) -> (i32, i32) {
    %c0_i32 = arith.constant 0 : i32
    %c0_i32_0 = arith.constant 0 : i32
    return %arg0, %c0_i32 : i32, i32
  }
}

</mosaic_0001>

<llo_original>
// kernel: multihead_attention_forward.2
$region0: #{multihead_attention_forward.2}
  #allocation0 [shape = 'u32[]', space=smem, size = 0x4, offset = 0x4, fixed_abs, tag = 'smem constant byte address 0x4 - core index']
  #allocation1 [shape = 'u32[72,128]{1,0:T(1,128)}', space=vmem, size = 0x9000, scoped, tag = 'internal scratch']
  %s0 = inlined_call_operand.hbm [shape: f32[16,16], index: 0, kind: input, shape index: {}]
  %s1 = inlined_call_operand.hbm [shape: f32[16,16], index: 1, kind: input, shape index: {}]
  %s2 = inlined_call_operand.hbm [shape: f32[16,16], index: 2, kind: input, shape index: {}]
  %s3 = inlined_call_operand.hbm [shape: f32[3,16,32], index: 3, kind: input, shape index: {}]
  %s4 = inlined_call_operand.vmem [shape: f32[3,32], index: 4, kind: input, shape index: {}]
  %s5 = inlined_call_operand.vmem [shape: f32[16,32], index: 5, kind: output, shape index: {0}]
  %s6 = inlined_call_operand.vmem [shape: f32[16,32], index: 6, kind: output, shape index: {1}]
  %s7 = inlined_call_operand.vmem [shape: f32[16,32], index: 7, kind: output, shape index: {2}]
  %8 = xla_tuple %s5, %s6, %s7
  %s9 = sld [smem:[#allocation0]]
  $region62: #{multihead_attention_forward.2} parent=0
    _
  %s11 = ssub.s32 1, %s9
  %s12 = scalar_select 0, %s11, %s9
  $region1: #{multihead_attention_forward.2} parent=0
    #allocation2 [shape = 'u8[8192]{0}', space=vmem, size = 0x2000, scoped, tag = 'input window, operand 0, single buffered']
    #allocation3 [shape = 's32[1]{0}', space=sflag, size = 0x4, scoped, tag = 'scoped memory for multihead_attention_forward.2']
    #allocation4 [shape = 'u8[8192]{0}', space=vmem, size = 0x2000, scoped, tag = 'input window, operand 1, single buffered']
    #allocation5 [shape = 's32[1]{0}', space=sflag, size = 0x4, scoped, tag = 'scoped memory for multihead_attention_forward.2']
    #allocation6 [shape = 'u8[8192]{0}', space=vmem, size = 0x2000, scoped, tag = 'input window, operand 2, single buffered']
    #allocation7 [shape = 'u8[24576]{0}', space=vmem, size = 0x6000, scoped, tag = 'input window, operand 3, single buffered']
    #allocation8 [shape = 's32[1]{0}', space=sflag, size = 0x4, scoped, tag = 'scoped memory for multihead_attention_forward.2']
    %13 = vsyncpa [#allocation3], 0
    %14 = vsyncpa [#allocation5], 0
    %15 = vsyncpa [#allocation8], 0
    // Predicated region
    $region2: #{multihead_attention_forward.2} parent=1 // pred_check
      _
    $region3: #{multihead_attention_forward.2} parent=1 // pred_check_branch
      %17 = sbr.rel (0) target = $region5
    $region4: #{multihead_attention_forward.2} parent=1 // pred_region
      %19 = vsyncadd [#allocation3], 0
      %s20 = sshll.u32 %s0, 4
      %s21 = int_to_ptr.hbm [resolvable:$true] %s20
      %s22 = sshll.u32 [#allocation2], 4
      %s23 = int_to_ptr.vmem [resolvable:$true] %s22
      %28 = dma.hbm_to_vmem [thread:$0]  %s21, 256, %s23, [#allocation3], 128, 128, 8
    $region5: #{multihead_attention_forward.2} parent=1 // pred_fallthru
      _
    // Predicated region
    $region6: #{multihead_attention_forward.2} parent=1 // pred_check
      _
    $region7: #{multihead_attention_forward.2} parent=1 // pred_check_branch
      %30 = sbr.rel (0) target = $region9
    $region8: #{multihead_attention_forward.2} parent=1 // pred_region
      %32 = vsyncadd [#allocation5], 0
      %s33 = sshll.u32 %s1, 4
      %s34 = int_to_ptr.hbm [resolvable:$true] %s33
      %s35 = sshll.u32 [#allocation4], 4
      %s36 = int_to_ptr.vmem [resolvable:$true] %s35
      %41 = dma.hbm_to_vmem [thread:$0]  %s34, 256, %s36, [#allocation5], 128, 128, 8
    $region9: #{multihead_attention_forward.2} parent=1 // pred_fallthru
      _
    // Predicated region
    $region10: #{multihead_attention_forward.2} parent=1 // pred_check
      _
    $region11: #{multihead_attention_forward.2} parent=1 // pred_check_branch
      %43 = sbr.rel (0) target = $region13
    $region12: #{multihead_attention_forward.2} parent=1 // pred_region
      %45 = vsyncadd [#allocation5], 0
      %s46 = sshll.u32 %s2, 4
      %s47 = int_to_ptr.hbm [resolvable:$true] %s46
      %s48 = sshll.u32 [#allocation6], 4
      %s49 = int_to_ptr.vmem [resolvable:$true] %s48
      %54 = dma.hbm_to_vmem [thread:$0]  %s47, 256, %s49, [#allocation5], 128, 128, 8
    $region13: #{multihead_attention_forward.2} parent=1 // pred_fallthru
      _
    // Predicated region
    $region14: #{multihead_attention_forward.2} parent=1 // pred_check
      _
    $region15: #{multihead_attention_forward.2} parent=1 // pred_check_branch
      %56 = sbr.rel (0) target = $region17
    $region16: #{multihead_attention_forward.2} parent=1 // pred_region
      %58 = vsyncadd [#allocation8], 0
      %s59 = sshll.u32 %s3, 4
      %s60 = int_to_ptr.hbm [resolvable:$true] %s59
      %s61 = sshll.u32 [#allocation7], 4
      %s62 = int_to_ptr.vmem [resolvable:$true] %s61
      %67 = dma.hbm_to_vmem [thread:$0]  %s60, 768, %s62, [#allocation8], 128, 128, 8
    $region17: #{multihead_attention_forward.2} parent=1 // pred_fallthru
      _
    // Predicated region
    $region18: #{multihead_attention_forward.2} parent=1 // pred_check
      _
    $region19: #{multihead_attention_forward.2} parent=1 // pred_check_branch
      %69 = sbr.rel (0) target = $region21
    $region20: #{multihead_attention_forward.2} parent=1 // pred_region
      _
    $region21: #{multihead_attention_forward.2} parent=1 // pred_fallthru
      _
    // Predicated region
    $region22: #{multihead_attention_forward.2} parent=1 // pred_check
      _
    $region23: #{multihead_attention_forward.2} parent=1 // pred_check_branch
      %71 = sbr.rel (0) target = $region25
    $region24: #{multihead_attention_forward.2} parent=1 // pred_region
      %73 = dma.done [#allocation3], 256
    $region25: #{multihead_attention_forward.2} parent=1 // pred_fallthru
      _
    // Predicated region
    $region26: #{multihead_attention_forward.2} parent=1 // pred_check
      _
    $region27: #{multihead_attention_forward.2} parent=1 // pred_check_branch
      %75 = sbr.rel (0) target = $region29
    $region28: #{multihead_attention_forward.2} parent=1 // pred_region
      %77 = dma.done [#allocation5], 256
    $region29: #{multihead_attention_forward.2} parent=1 // pred_fallthru
      _
    // Predicated region
    $region30: #{multihead_attention_forward.2} parent=1 // pred_check
      _
    $region31: #{multihead_attention_forward.2} parent=1 // pred_check_branch
      %79 = sbr.rel (0) target = $region33
    $region32: #{multihead_attention_forward.2} parent=1 // pred_region
      %81 = dma.done [#allocation5], 256
    $region33: #{multihead_attention_forward.2} parent=1 // pred_fallthru
      _
    // Predicated region
    $region34: #{multihead_attention_forward.2} parent=1 // pred_check
      _
    $region35: #{multihead_attention_forward.2} parent=1 // pred_check_branch
      %83 = sbr.rel (0) target = $region37
    $region36: #{multihead_attention_forward.2} parent=1 // pred_region
      %85 = dma.done [#allocation8], 768
    $region37: #{multihead_attention_forward.2} parent=1 // pred_fallthru
      _
    %v86 = vld [vmem:[#allocation2] sm:$0xff]
    %v87 = vld [vmem:[#allocation2 + $0x8] sm:$0xff]
    %v88 = vld [vmem:[#allocation7] sm:$0xff]
    %v89 = vld [vmem:[#allocation7 + $0x8] sm:$0xff]
    %v90 = vld [vmem:[%s4] sm:$0x1]
    %v91 = vperm.slane %v90, 0
    %vm92 = vcmask 130048
    %v94 = vsel %vm92, %v86, 0
    %v97 = vsel %vm92, %v87, 0
    %99 = vmatpush.msra.mxu0 0.0
    %100 = vmatpush.msra.mxu0 0.0
    %101 = vmatpush.msra.mxu0 0.0
    %102 = vmatpush.msra.mxu0 0.0
    %103 = vmatpush.msra.mxu0 0.0
    %104 = vmatpush.msra.mxu0 0.0
    %105 = vmatpush.msra.mxu0 0.0
    %106 = vmatpush.msra.mxu0 0.0
    %107 = vmatpush.msra.mxu0 0.0
    %108 = vmatpush.msra.mxu0 0.0
    %109 = vmatpush.msra.mxu0 0.0
    %110 = vmatpush.msra.mxu0 0.0
    %111 = vmatpush.msra.mxu0 0.0
    %112 = vmatpush.msra.mxu0 0.0
    %113 = vmatpush.msra.mxu0 %v89
    %114 = vmatpush.msra.mxu0 %v88
    %115 = vmatmul.f32.gmra.mxu0 %v94
    %v116 = vpop.f32.mrf.mxu0
    %v117 = vadd.f32 %v91, %v116
    %118 = vmatmul.f32.gmra.mxu0 %v97
    %v119 = vpop.f32.mrf.mxu0
    %v120 = vadd.f32 %v91, %v119
    %121 = vdwg.mxu0
    %vm122 = vcmask 261120
    %123 = vst.msk [vmem:[%s5] sm:$0xff] %vm122, %v117
    %124 = vst.msk [vmem:[%s5 + $0x8] sm:$0xff] %vm122, %v120
    %v125 = vld [vmem:[#allocation4] sm:$0xff]
    %v126 = vld [vmem:[#allocation4 + $0x8] sm:$0xff]
    %s127 = scalar_lea.vmem [#allocation7], 16
    %v128 = vld [vmem:[%s127] sm:$0xff]
    %v129 = vld [vmem:[%s127 + $0x8] sm:$0xff]
    %v130 = vld [vmem:[%s4 + $0x1] sm:$0x1]
    %v131 = vperm.slane %v130, 0
    %v133 = vsel %vm92, %v125, 0
    %v136 = vsel %vm92, %v126, 0
    %138 = vmatpush.msra.mxu0 0.0
    %139 = vmatpush.msra.mxu0 0.0
    %140 = vmatpush.msra.mxu0 0.0
    %141 = vmatpush.msra.mxu0 0.0
    %142 = vmatpush.msra.mxu0 0.0
    %143 = vmatpush.msra.mxu0 0.0
    %144 = vmatpush.msra.mxu0 0.0
    %145 = vmatpush.msra.mxu0 0.0
    %146 = vmatpush.msra.mxu0 0.0
    %147 = vmatpush.msra.mxu0 0.0
    %148 = vmatpush.msra.mxu0 0.0
    %149 = vmatpush.msra.mxu0 0.0
    %150 = vmatpush.msra.mxu0 0.0
    %151 = vmatpush.msra.mxu0 0.0
    %152 = vmatpush.msra.mxu0 %v129
    %153 = vmatpush.msra.mxu0 %v128
    %154 = vmatmul.f32.gmra.mxu0 %v133
    %v155 = vpop.f32.mrf.mxu0
    %v156 = vadd.f32 %v131, %v155
    %157 = vmatmul.f32.gmra.mxu0 %v136
    %v158 = vpop.f32.mrf.mxu0
    %v159 = vadd.f32 %v131, %v158
    %160 = vdwg.mxu0
    %161 = vst.msk [vmem:[%s6] sm:$0xff] %vm122, %v156
    %162 = vst.msk [vmem:[%s6 + $0x8] sm:$0xff] %vm122, %v159
    %v163 = vld [vmem:[#allocation6] sm:$0xff]
    %v164 = vld [vmem:[#allocation6 + $0x8] sm:$0xff]
    %s165 = scalar_lea.vmem [#allocation7], 32
    %v166 = vld [vmem:[%s165] sm:$0xff]
    %v167 = vld [vmem:[%s165 + $0x8] sm:$0xff]
    %v168 = vld [vmem:[%s4 + $0x2] sm:$0x1]
    %v169 = vperm.slane %v168, 0
    %v171 = vsel %vm92, %v163, 0
    %v174 = vsel %vm92, %v164, 0
    %176 = vmatpush.msra.mxu0 0.0
    %177 = vmatpush.msra.mxu0 0.0
    %178 = vmatpush.msra.mxu0 0.0
    %179 = vmatpush.msra.mxu0 0.0
    %180 = vmatpush.msra.mxu0 0.0
    %181 = vmatpush.msra.mxu0 0.0
    %182 = vmatpush.msra.mxu0 0.0
    %183 = vmatpush.msra.mxu0 0.0
    %184 = vmatpush.msra.mxu0 0.0
    %185 = vmatpush.msra.mxu0 0.0
    %186 = vmatpush.msra.mxu0 0.0
    %187 = vmatpush.msra.mxu0 0.0
    %188 = vmatpush.msra.mxu0 0.0
    %189 = vmatpush.msra.mxu0 0.0
    %190 = vmatpush.msra.mxu0 %v167
    %191 = vmatpush.msra.mxu0 %v166
    %192 = vmatmul.f32.gmra.mxu0 %v171
    %v193 = vpop.f32.mrf.mxu0
    %v194 = vadd.f32 %v169, %v193
    %195 = vmatmul.f32.gmra.mxu0 %v174
    %v196 = vpop.f32.mrf.mxu0
    %v197 = vadd.f32 %v169, %v196
    %198 = vdwg.mxu0
    %199 = vst.msk [vmem:[%s7] sm:$0xff] %vm122, %v194
    %200 = vst.msk [vmem:[%s7 + $0x8] sm:$0xff] %vm122, %v197
    // Predicated region
    $region38: #{multihead_attention_forward.2} parent=1 // pred_check
      _
    $region39: #{multihead_attention_forward.2} parent=1 // pred_check_branch
      %202 = sbr.rel (0) target = $region41
    $region40: #{multihead_attention_forward.2} parent=1 // pred_region
      _
    $region41: #{multihead_attention_forward.2} parent=1 // pred_fallthru
      _
    // Predicated region
    $region42: #{multihead_attention_forward.2} parent=1 // pred_check
      _
    $region43: #{multihead_attention_forward.2} parent=1 // pred_check_branch
      %204 = sbr.rel (0) target = $region45
    $region44: #{multihead_attention_forward.2} parent=1 // pred_region
      _
    $region45: #{multihead_attention_forward.2} parent=1 // pred_fallthru
      _
    // Predicated region
    $region46: #{multihead_attention_forward.2} parent=1 // pred_check
      _
    $region47: #{multihead_attention_forward.2} parent=1 // pred_check_branch
      %206 = sbr.rel (0) target = $region49
    $region48: #{multihead_attention_forward.2} parent=1 // pred_region
      _
    $region49: #{multihead_attention_forward.2} parent=1 // pred_fallthru
      _
    // Predicated region
    $region50: #{multihead_attention_forward.2} parent=1 // pred_check
      _
    $region51: #{multihead_attention_forward.2} parent=1 // pred_check_branch
      %208 = sbr.rel (0) target = $region53
    $region52: #{multihead_attention_forward.2} parent=1 // pred_region
      _
    $region53: #{multihead_attention_forward.2} parent=1 // pred_fallthru
      _
    // Predicated region
    $region54: #{multihead_attention_forward.2} parent=1 // pred_check
      _
    $region55: #{multihead_attention_forward.2} parent=1 // pred_check_branch
      %210 = sbr.rel (0) target = $region57
    $region56: #{multihead_attention_forward.2} parent=1 // pred_region
      _
    $region57: #{multihead_attention_forward.2} parent=1 // pred_fallthru
      _
    // Predicated region
    $region58: #{multihead_attention_forward.2} parent=1 // pred_check
      _
    $region59: #{multihead_attention_forward.2} parent=1 // pred_check_branch
      %212 = sbr.rel (0) target = $region61
    $region60: #{multihead_attention_forward.2} parent=1 // pred_region
      _
    $region61: #{multihead_attention_forward.2} parent=1 // pred_fallthru
      _
    %213 = vsyncpa [#allocation3], 1
    %214 = vsyncpa [#allocation5], 1
    %215 = vsyncpa [#allocation8], 1

// kernel: multihead_attention_forward.3
$region0: #{multihead_attention_forward.3}
  #allocation0 [shape = 'u32[]', space=smem, size = 0x4, offset = 0x4, fixed_abs, tag = 'smem constant byte address 0x4 - core index']
  #allocation1 [shape = 'u32[72,128]{1,0:T(1,128)}', space=vmem, size = 0x9000, scoped, tag = 'internal scratch']
  %s0 = inlined_call_operand.vmem [shape: f32[2,4,8,8], index: 0, kind: input, shape index: {}]
  %s1 = inlined_call_operand.vmem [shape: f32[2,4,8,8], index: 1, kind: input, shape index: {}]
  %s2 = inlined_call_operand.vmem [shape: f32[2,4,8,8], index: 2, kind: input, shape index: {}]
  %s3 = inlined_call_operand.vmem [shape: f32[4,8,32], index: 3, kind: input, shape index: {}]
  %s4 = inlined_call_operand.vmem [shape: f32[1,32], index: 4, kind: input, shape index: {}]
  %s5 = inlined_call_operand.hbm [shape: f32[2,8,32], index: 5, kind: output, shape index: {0}]
  %s6 = inlined_call_operand.hbm [shape: f32[2,4,8,8], index: 6, kind: output, shape index: {1}]
  %7 = xla_tuple %s5, %s6
  %s8 = sld [smem:[#allocation0]]
  $region69: #{multihead_attention_forward.3} parent=0
    _
  %s10 = ssub.s32 1, %s8
  %s11 = scalar_select 0, %s10, %s8
  $region1: #{multihead_attention_forward.3} parent=0
    #allocation2 [shape = 'u8[8192]{0}', space=vmem, size = 0x2000, scoped, tag = 'output window, operand 0']
    #allocation3 [shape = 's32[2]{0}', space=sflag, size = 0x8, scoped, tag = 'scoped memory for multihead_attention_forward.3']
    #allocation4 [shape = 'u8[8192]{0}', space=vmem, size = 0x2000, scoped, tag = 'output window, operand 1']
    #allocation5 [shape = 's32[2]{0}', space=sflag, size = 0x8, scoped, tag = 'scoped memory for multihead_attention_forward.3']
    %12 = vsyncpa [#allocation3], 0
    %s13 = scalar_lea.sflag [#allocation3], 1
    %14 = vsyncpa %s13, 0
    %15 = vsyncpa [#allocation5], 0
    %s16 = scalar_lea.sflag [#allocation5], 1
    %17 = vsyncpa %s16, 0
    loop: start=0, step=1, limit=10
    $region2: #{multihead_attention_forward.3} parent=1 // loop_pre_header
      _
    $region3: #{multihead_attention_forward.3} parent=1 // loop_header
      %s19 = sphi 0, %s23
      %p20 = scmp.ge.s32.totalorder %s19, 10
      %s26 = sphi 0, %s38
      %s27 = sphi 0, %s34
      %s28 = sphi 0, %s26
      %s29 = sphi 0, %s27
      %s30 = sphi 0, %s28
      %s31 = sphi 0, %s29
      %s43 = sphi 0, %s45
      %s46 = sphi 0, %s43
      %s47 = sphi 0, %s46
      %s63 = sphi 0, %s47
      %s71 = sphi 0, %s73
      %s74 = sphi 0, %s71
      %s75 = sphi 0, %s74
      %s91 = sphi 0, %s75
      %s99 = sphi 0, %s101
      %s102 = sphi 0, %s99
      %s103 = sphi 0, %s102
      %s119 = sphi 0, %s103
      %s125 = sphi 0, %s127
      %s128 = sphi 0, %s125
      %s129 = sphi 0, %s128
      %s145 = sphi 0, %s129
      %s149 = sphi 0, %s149
      %s151 = sphi 0, %s149
      %s152 = sphi 0, %s151
      %s166 = sphi 0, %s152
      %s172 = sphi 0, %s174
      %s175 = sphi 0, %s172
      %s176 = sphi 0, %s175
      %s192 = sphi 0, %s176
      %s200 = sphi 0, %s202
      %s203 = sphi 0, %s200
      %s204 = sphi 0, %s203
      %s220 = sphi 0, %s204
    $region4: #{multihead_attention_forward.3} parent=1 // loop_header_branch
      %22 = sbr.rel (%p20) target = $region8
    $region5: #{multihead_attention_forward.3} parent=1 // loop_body
      %s24 = ssub.s32 %s19, 1
      %s25 = ssub.s32 %s19, 2
      %s32 = sadd.s32 1, %s27
      %p33 = scmp.ge.s32.totalorder %s32, 4
      %s34 = scalar_select %p33, 0, %s32
      %s35 = sadd.s32 1, %s26
      %s36 = scalar_select %p33, %s35, %s26
      %p37 = scmp.ge.s32.totalorder %s36, 2
      %s38 = scalar_select %p37, 0, %s36
      %s39 = ssub.s32 %s26, %s38
      %s40 = ssub.s32 %s27, %s34
      %s41 = sor.u32 %s39, %s40
      %p42 = scmp.eq.s32.totalorder %s41, 0
      %s44 = sadd.s32 %s43, 1
      %s45 = scalar_select %p42, %s43, %s44
      %p48 = pneg %p42
      %p49 = scmp.eq.s32.totalorder %s19, 7
      %p50 = por %p48, %p49
      %p51 = scmp.ne.s32.totalorder %s43, %s46
      %p52 = scmp.eq.s32.totalorder %s19, 0
      %p53 = por %p51, %p52
      %p54 = scmp.ne.s32.totalorder %s43, %s46
      %p55 = scmp.eq.s32.totalorder %s24, 7
      %p56 = por %p54, %p55
      %p57 = scmp.ne.s32.totalorder %s46, %s47
      %p58 = scmp.eq.s32.totalorder %s24, 0
      %p59 = por %p57, %p58
      %p60 = scmp.ne.s32.totalorder %s46, %s47
      %p61 = scmp.eq.s32.totalorder %s25, 7
      %p62 = por %p60, %p61
      %p64 = scmp.ne.s32.totalorder %s47, %s63
      %p65 = scmp.eq.s32.totalorder %s25, 0
      %p66 = por %p64, %p65
      %s67 = ssub.s32 %s26, %s38
      %s68 = ssub.s32 %s27, %s34
      %s69 = sor.u32 %s67, %s68
      %p70 = scmp.eq.s32.totalorder %s69, 0
      %s72 = sadd.s32 %s71, 1
      %s73 = scalar_select %p70, %s71, %s72
      %p76 = pneg %p70
      %p77 = scmp.eq.s32.totalorder %s19, 7
      %p78 = por %p76, %p77
      %p79 = scmp.ne.s32.totalorder %s71, %s74
      %p80 = scmp.eq.s32.totalorder %s19, 0
      %p81 = por %p79, %p80
      %p82 = scmp.ne.s32.totalorder %s71, %s74
      %p83 = scmp.eq.s32.totalorder %s24, 7
      %p84 = por %p82, %p83
      %p85 = scmp.ne.s32.totalorder %s74, %s75
      %p86 = scmp.eq.s32.totalorder %s24, 0
      %p87 = por %p85, %p86
      %p88 = scmp.ne.s32.totalorder %s74, %s75
      %p89 = scmp.eq.s32.totalorder %s25, 7
      %p90 = por %p88, %p89
      %p92 = scmp.ne.s32.totalorder %s75, %s91
      %p93 = scmp.eq.s32.totalorder %s25, 0
      %p94 = por %p92, %p93
      %s95 = ssub.s32 %s26, %s38
      %s96 = ssub.s32 %s27, %s34
      %s97 = sor.u32 %s95, %s96
      %p98 = scmp.eq.s32.totalorder %s97, 0
      %s100 = sadd.s32 %s99, 1
      %s101 = scalar_select %p98, %s99, %s100
      %p104 = pneg %p98
      %p105 = scmp.eq.s32.totalorder %s19, 7
      %p106 = por %p104, %p105
      %p107 = scmp.ne.s32.totalorder %s99, %s102
      %p108 = scmp.eq.s32.totalorder %s19, 0
      %p109 = por %p107, %p108
      %p110 = scmp.ne.s32.totalorder %s99, %s102
      %p111 = scmp.eq.s32.totalorder %s24, 7
      %p112 = por %p110, %p111
      %p113 = scmp.ne.s32.totalorder %s102, %s103
      %p114 = scmp.eq.s32.totalorder %s24, 0
      %p115 = por %p113, %p114
      %p116 = scmp.ne.s32.totalorder %s102, %s103
      %p117 = scmp.eq.s32.totalorder %s25, 7
      %p118 = por %p116, %p117
      %p120 = scmp.ne.s32.totalorder %s103, %s119
      %p121 = scmp.eq.s32.totalorder %s25, 0
      %p122 = por %p120, %p121
      %s123 = ssub.s32 %s27, %s34
      %p124 = scmp.eq.s32.totalorder %s123, 0
      %s126 = sadd.s32 %s125, 1
      %s127 = scalar_select %p124, %s125, %s126
      %p130 = pneg %p124
      %p131 = scmp.eq.s32.totalorder %s19, 7
      %p132 = por %p130, %p131
      %p133 = scmp.ne.s32.totalorder %s125, %s128
      %p134 = scmp.eq.s32.totalorder %s19, 0
      %p135 = por %p133, %p134
      %p136 = scmp.ne.s32.totalorder %s125, %s128
      %p137 = scmp.eq.s32.totalorder %s24, 7
      %p138 = por %p136, %p137
      %p139 = scmp.ne.s32.totalorder %s128, %s129
      %p140 = scmp.eq.s32.totalorder %s24, 0
      %p141 = por %p139, %p140
      %p142 = scmp.ne.s32.totalorder %s128, %s129
      %p143 = scmp.eq.s32.totalorder %s25, 7
      %p144 = por %p142, %p143
      %p146 = scmp.ne.s32.totalorder %s129, %s145
      %p147 = scmp.eq.s32.totalorder %s25, 0
      %p148 = por %p146, %p147
      %s150 = sadd.s32 %s149, 1
      %p153 = scmp.eq.s32.totalorder %s19, 7
      %p154 = scmp.ne.s32.totalorder %s149, %s151
      %p155 = scmp.eq.s32.totalorder %s19, 0
      %p156 = por %p154, %p155
      %p157 = scmp.ne.s32.totalorder %s149, %s151
      %p158 = scmp.eq.s32.totalorder %s24, 7
      %p159 = por %p157, %p158
      %p160 = scmp.ne.s32.totalorder %s151, %s152
      %p161 = scmp.eq.s32.totalorder %s24, 0
      %p162 = por %p160, %p161
      %p163 = scmp.ne.s32.totalorder %s151, %s152
      %p164 = scmp.eq.s32.totalorder %s25, 7
      %p165 = por %p163, %p164
      %p167 = scmp.ne.s32.totalorder %s152, %s166
      %p168 = scmp.eq.s32.totalorder %s25, 0
      %p169 = por %p167, %p168
      %s170 = ssub.s32 %s26, %s38
      %p171 = scmp.eq.s32.totalorder %s170, 0
      %s173 = sadd.s32 %s172, 1
      %s174 = scalar_select %p171, %s172, %s173
      %p177 = pneg %p171
      %p178 = scmp.eq.s32.totalorder %s19, 7
      %p179 = por %p177, %p178
      %p180 = scmp.ne.s32.totalorder %s172, %s175
      %p181 = scmp.eq.s32.totalorder %s19, 0
      %p182 = por %p180, %p181
      %p183 = scmp.ne.s32.totalorder %s172, %s175
      %p184 = scmp.eq.s32.totalorder %s24, 7
      %p185 = por %p183, %p184
      %p186 = scmp.ne.s32.totalorder %s175, %s176
      %p187 = scmp.eq.s32.totalorder %s24, 0
      %p188 = por %p186, %p187
      %p189 = scmp.ne.s32.totalorder %s175, %s176
      %p190 = scmp.eq.s32.totalorder %s25, 7
      %p191 = por %p189, %p190
      %p193 = scmp.ne.s32.totalorder %s176, %s192
      %p194 = scmp.eq.s32.totalorder %s25, 0
      %p195 = por %p193, %p194
      %s196 = ssub.s32 %s26, %s38
      %s197 = ssub.s32 %s27, %s34
      %s198 = sor.u32 %s196, %s197
      %p199 = scmp.eq.s32.totalorder %s198, 0
      %s201 = sadd.s32 %s200, 1
      %s202 = scalar_select %p199, %s200, %s201
      %p205 = pneg %p199
      %p206 = scmp.eq.s32.totalorder %s19, 7
      %p207 = por %p205, %p206
      %p208 = scmp.ne.s32.totalorder %s200, %s203
      %p209 = scmp.eq.s32.totalorder %s19, 0
      %p210 = por %p208, %p209
      %p211 = scmp.ne.s32.totalorder %s200, %s203
      %p212 = scmp.eq.s32.totalorder %s24, 7
      %p213 = por %p211, %p212
      %p214 = scmp.ne.s32.totalorder %s203, %s204
      %p215 = scmp.eq.s32.totalorder %s24, 0
      %p216 = por %p214, %p215
      %p217 = scmp.ne.s32.totalorder %s203, %s204
      %p218 = scmp.eq.s32.totalorder %s25, 7
      %p219 = por %p217, %p218
      %p221 = scmp.ne.s32.totalorder %s204, %s220
      %p222 = scmp.eq.s32.totalorder %s25, 0
      %p223 = por %p221, %p222
      %p224 = scmp.le.s32.totalorder 1, %s19
      %p225 = scmp.lt.s32.totalorder %s19, 9
      %p226 = pnand %p224, %p225
      %p227 = pneg %p226
      // Predicated region
      $region9: #{multihead_attention_forward.3} parent=5 // pred_check
        _
      $region10: #{multihead_attention_forward.3} parent=5 // pred_check_branch
        %229 = sbr.rel (%p226) target = $region12
      $region11: #{multihead_attention_forward.3} parent=5 // pred_region
        %s230 = ssub.s32 %s19, 1
        // Predicated region
        $region13: #{multihead_attention_forward.3} parent=11 // pred_check
          %p231 = pneg %p162
        $region14: #{multihead_attention_forward.3} parent=11 // pred_check_branch
          %233 = sbr.rel (%p231) target = $region16
        $region15: #{multihead_attention_forward.3} parent=11 // pred_region
          _
        $region16: #{multihead_attention_forward.3} parent=11 // pred_fallthru
          _
      $region12: #{multihead_attention_forward.3} parent=5 // pred_fallthru
        _
      %p234 = scmp.lt.s32.totalorder %s19, 8
      // Predicated region
      $region17: #{multihead_attention_forward.3} parent=5 // pred_check
        %p235 = pneg %p234
      $region18: #{multihead_attention_forward.3} parent=5 // pred_check_branch
        %237 = sbr.rel (%p235) target = $region20
      $region19: #{multihead_attention_forward.3} parent=5 // pred_region
        // Predicated region
        $region21: #{multihead_attention_forward.3} parent=19 // pred_check
          %p238 = pneg %p53
        $region22: #{multihead_attention_forward.3} parent=19 // pred_check_branch
          %240 = sbr.rel (%p238) target = $region24
        $region23: #{multihead_attention_forward.3} parent=19 // pred_region
          %p241 = scmp.lt.s32.totalorder %s26, 1
          %s242 = scalar_select %p241, %s26, 1
          %p243 = scmp.lt.s32.totalorder %s27, 3
          %s244 = scalar_select %p243, %s27, 3
          %s245 = smul.addr %s242, 4
          %s246 = sadd.s32 %s244, %s245
          %s247 = smul.addr %s246, 8
          %s248 = scalar_lea.vmem %s0, %s247
        $region24: #{multihead_attention_forward.3} parent=19 // pred_fallthru
          _
        // Predicated region
        $region25: #{multihead_attention_forward.3} parent=19 // pred_check
          %p249 = pneg %p81
        $region26: #{multihead_attention_forward.3} parent=19 // pred_check_branch
          %251 = sbr.rel (%p249) target = $region28
        $region27: #{multihead_attention_forward.3} parent=19 // pred_region
          %p252 = scmp.lt.s32.totalorder %s26, 1
          %s253 = scalar_select %p252, %s26, 1
          %p254 = scmp.lt.s32.totalorder %s27, 3
          %s255 = scalar_select %p254, %s27, 3
          %s256 = smul.addr %s253, 4
          %s257 = sadd.s32 %s255, %s256
          %s258 = smul.addr %s257, 8
          %s259 = scalar_lea.vmem %s1, %s258
        $region28: #{multihead_attention_forward.3} parent=19 // pred_fallthru
          _
        // Predicated region
        $region29: #{multihead_attention_forward.3} parent=19 // pred_check
          %p260 = pneg %p109
        $region30: #{multihead_attention_forward.3} parent=19 // pred_check_branch
          %262 = sbr.rel (%p260) target = $region32
        $region31: #{multihead_attention_forward.3} parent=19 // pred_region
          %p263 = scmp.lt.s32.totalorder %s26, 1
          %s264 = scalar_select %p263, %s26, 1
          %p265 = scmp.lt.s32.totalorder %s27, 3
          %s266 = scalar_select %p265, %s27, 3
          %s267 = smul.addr %s264, 4
          %s268 = sadd.s32 %s266, %s267
          %s269 = smul.addr %s268, 8
          %s270 = scalar_lea.vmem %s2, %s269
        $region32: #{multihead_attention_forward.3} parent=19 // pred_fallthru
          _
        // Predicated region
        $region33: #{multihead_attention_forward.3} parent=19 // pred_check
          %p271 = pneg %p135
        $region34: #{multihead_attention_forward.3} parent=19 // pred_check_branch
          %273 = sbr.rel (%p271) target = $region36
        $region35: #{multihead_attention_forward.3} parent=19 // pred_region
          %p274 = scmp.lt.s32.totalorder %s27, 3
          %s275 = scalar_select %p274, %s27, 3
          %s276 = smul.addr %s275, 8
          %s277 = scalar_lea.vmem %s3, %s276
        $region36: #{multihead_attention_forward.3} parent=19 // pred_fallthru
          _
      $region20: #{multihead_attention_forward.3} parent=5 // pred_fallthru
        _
      %p278 = scmp.le.s32.totalorder 1, %s19
      %p279 = scmp.lt.s32.totalorder %s19, 9
      %p280 = pnand %p278, %p279
      %p281 = pneg %p280
      // Predicated region
      $region37: #{multihead_attention_forward.3} parent=5 // pred_check
        _
      $region38: #{multihead_attention_forward.3} parent=5 // pred_check_branch
        %283 = sbr.rel (%p280) target = $region40
      $region39: #{multihead_attention_forward.3} parent=5 // pred_region
        %s284 = ssub.s32 %s19, 1
        %p285 = scmp.lt.s32.totalorder %s28, 1
        %s286 = scalar_select %p285, %s28, 1
        %p287 = scmp.lt.s32.totalorder %s29, 3
        %s288 = scalar_select %p287, %s29, 3
        %s289 = smul.addr %s286, 4
        %s290 = sadd.s32 %s288, %s289
        %s291 = smul.addr %s290, 8
        %s292 = scalar_lea.vmem %s0, %s291
        %p293 = pneg %p59
        %p294 = pneg %p56
        %p295 = scmp.lt.s32.totalorder %s28, 1
        %s296 = scalar_select %p295, %s28, 1
        %p297 = scmp.lt.s32.totalorder %s29, 3
        %s298 = scalar_select %p297, %s29, 3
        %s299 = smul.addr %s296, 4
        %s300 = sadd.s32 %s298, %s299
        %s301 = smul.addr %s300, 8
        %s302 = scalar_lea.vmem %s1, %s301
        %p303 = pneg %p87
        %p304 = pneg %p84
        %p305 = scmp.lt.s32.totalorder %s28, 1
        %s306 = scalar_select %p305, %s28, 1
        %p307 = scmp.lt.s32.totalorder %s29, 3
        %s308 = scalar_select %p307, %s29, 3
        %s309 = smul.addr %s306, 4
        %s310 = sadd.s32 %s308, %s309
        %s311 = smul.addr %s310, 8
        %s312 = scalar_lea.vmem %s2, %s311
        %p313 = pneg %p115
        %p314 = pneg %p112
        %p315 = scmp.lt.s32.totalorder %s29, 3
        %s316 = scalar_select %p315, %s29, 3
        %s317 = smul.addr %s316, 8
        %s318 = scalar_lea.vmem %s3, %s317
        %p319 = pneg %p141
        %p320 = pneg %p138
        %p321 = pneg %p162
        %p322 = pneg %p159
        %p323 = pneg %p188
        %p324 = pneg %p185
        %s325 = sand.u32 %s175, 1
        %s326 = scalar_lea.sflag [#allocation3], %s325
        %s327 = sand.u32 %s175, 1
        %s328 = smul.addr %s327, 8
        %s329 = scalar_lea.vmem [#allocation2], %s328
        %p330 = pneg %p216
        %p331 = pneg %p213
        %s332 = sand.u32 %s203, 1
        %s333 = scalar_lea.sflag [#allocation5], %s332
        %s334 = sand.u32 %s203, 1
        %s335 = smul.addr %s334, 8
        %s336 = scalar_lea.vmem [#allocation4], %s335
        %p337 = scmp.lt.s32.totalorder %s28, 1
        %s338 = scalar_select %p337, %s28, 1
        %p339 = scmp.lt.s32.totalorder %s29, 3
        %s340 = scalar_select %p339, %s29, 3
        %s341 = smul.addr %s338, 4
        %s342 = sadd.s32 %s340, %s341
        %s343 = smul.addr %s342, 8
        %s344 = scalar_lea.vmem %s0, %s343
        %p345 = scmp.lt.s32.totalorder %s28, 1
        %s346 = scalar_select %p345, %s28, 1
        %p347 = scmp.lt.s32.totalorder %s29, 3
        %s348 = scalar_select %p347, %s29, 3
        %s349 = smul.addr %s346, 4
        %s350 = sadd.s32 %s348, %s349
        %s351 = smul.addr %s350, 8
        %s352 = scalar_lea.vmem %s1, %s351
        %p353 = scmp.lt.s32.totalorder %s28, 1
        %s354 = scalar_select %p353, %s28, 1
        %p355 = scmp.lt.s32.totalorder %s29, 3
        %s356 = scalar_select %p355, %s29, 3
        %s357 = smul.addr %s354, 4
        %s358 = sadd.s32 %s356, %s357
        %s359 = smul.addr %s358, 8
        %s360 = scalar_lea.vmem %s2, %s359
        %p361 = scmp.lt.s32.totalorder %s29, 3
        %s362 = scalar_select %p361, %s29, 3
        %s363 = smul.addr %s362, 8
        %s364 = scalar_lea.vmem %s3, %s363
        %v365 = vld [vmem:[%s344] sm:$0xff]
        %v366 = vmul.f32 %v365, 0.35355338
        %v367 = vld [vmem:[%s352] sm:$0xff]
        %vm368 = vcmask 64512
        %v370 = vsel %vm368, %v366, 0
        %v373 = vsel %vm368, %v367, 0
        %375 = vmatpush.xpose.msra.mxu0 0.0
        %376 = vmatpush.xpose.msra.mxu0 0.0
        %377 = vmatpush.xpose.msra.mxu0 0.0
        %378 = vmatpush.xpose.msra.mxu0 0.0
        %379 = vmatpush.xpose.msra.mxu0 0.0
        %380 = vmatpush.xpose.msra.mxu0 0.0
        %381 = vmatpush.xpose.msra.mxu0 0.0
        %382 = vmatpush.xpose.msra.mxu0 0.0
        %383 = vmatpush.xpose.msra.mxu0 0.0
        %384 = vmatpush.xpose.msra.mxu0 0.0
        %385 = vmatpush.xpose.msra.mxu0 0.0
        %386 = vmatpush.xpose.msra.mxu0 0.0
        %387 = vmatpush.xpose.msra.mxu0 0.0
        %388 = vmatpush.xpose.msra.mxu0 0.0
        %389 = vmatpush.xpose.msra.mxu0 0.0
        %390 = vmatpush.xpose.msra.mxu0 %v373
        %391 = vmatmul.f32.gmra.mxu0 %v370
        %v392 = vpop.f32.mrf.mxu0
        %v393 = vadd.f32 0.0, %v392
        %394 = vdwg.mxu0
        %v395 = vsel %vm368, %v393, -inf
        %396 = vmax.xlane.f32.xlu0 %v395
        %v397 = vpop.xlane.xlu0 %396
        %v398 = vsub.f32 %v393, %v397
        %v399 = vmul.f32 %v398, 1.442695
        %v400 = vpow.pop %v399
        %v401 = vsel %vm368, %v400, 0.0
        %402 = vadd.xlane.f32.xlu0 %v401
        %v403 = vpop.xlane.xlu0 %402
        %v404 = vrcp.pop %v403
        %v405 = vmul.f32 %v403, %v404
        %v406 = vsub.f32 1.0, %v405
        %v407 = vmul.f32 %v404, %v406
        %v408 = vadd.f32 %v404, %v407
        %vm409 = vweird.f32 %v403
        %vm410 = vweird.f32 %v404
        %vm411 = vmor %vm409, %vm410
        %v412 = vsel %vm411, %v404, %v408
        %v413 = vand.u32 2147483647, %v403
        %vm414 = vcmp.eq.f32.partialorder %v413, 8.507059e+37
        %v415 = vand.u32 %v403, 2147483648
        %v416 = vor.u32 1.1754944e-38, %v415
        %v417 = vsel %vm414, %v416, %v412
        %v418 = vmul.f32 %v400, %v417
        %419 = vst.msk [vmem:[%s336] sm:$0xff] %vm368, %v418
        %v420 = vld [vmem:[%s360] sm:$0xff]
        %v422 = vsel %vm368, %v418, 0
        %424 = vmatpush.msra.mxu0 0.0
        %425 = vmatpush.msra.mxu0 0.0
        %426 = vmatpush.msra.mxu0 0.0
        %427 = vmatpush.msra.mxu0 0.0
        %428 = vmatpush.msra.mxu0 0.0
        %429 = vmatpush.msra.mxu0 0.0
        %430 = vmatpush.msra.mxu0 0.0
        %431 = vmatpush.msra.mxu0 0.0
        %432 = vmatpush.msra.mxu0 0.0
        %433 = vmatpush.msra.mxu0 0.0
        %434 = vmatpush.msra.mxu0 0.0
        %435 = vmatpush.msra.mxu0 0.0
        %436 = vmatpush.msra.mxu0 0.0
        %437 = vmatpush.msra.mxu0 0.0
        %438 = vmatpush.msra.mxu0 0.0
        %439 = vmatpush.msra.mxu0 %v420
        %440 = vmatmul.f32.gmra.mxu0 %v422
        %v441 = vpop.f32.mrf.mxu0
        %v442 = vadd.f32 0.0, %v441
        %443 = vdwg.mxu0
        %v444 = vld [vmem:[%s364] sm:$0xff]
        %v446 = vsel %vm368, %v442, 0
        %448 = vmatpush.msra.mxu0 0.0
        %449 = vmatpush.msra.mxu0 0.0
        %450 = vmatpush.msra.mxu0 0.0
        %451 = vmatpush.msra.mxu0 0.0
        %452 = vmatpush.msra.mxu0 0.0
        %453 = vmatpush.msra.mxu0 0.0
        %454 = vmatpush.msra.mxu0 0.0
        %455 = vmatpush.msra.mxu0 0.0
        %456 = vmatpush.msra.mxu0 0.0
        %457 = vmatpush.msra.mxu0 0.0
        %458 = vmatpush.msra.mxu0 0.0
        %459 = vmatpush.msra.mxu0 0.0
        %460 = vmatpush.msra.mxu0 0.0
        %461 = vmatpush.msra.mxu0 0.0
        %462 = vmatpush.msra.mxu0 0.0
        %463 = vmatpush.msra.mxu0 %v444
        %464 = vmatmul.f32.gmra.mxu0 %v446
        %v465 = vpop.f32.mrf.mxu0
        %v466 = vadd.f32 0.0, %v465
        %467 = vdwg.mxu0
        %p468 = scmp.eq.s32.totalorder %s29, 0
        // Predicated region
        $region41: #{multihead_attention_forward.3} parent=39 // pred_check
          %p469 = pneg %p468
        $region42: #{multihead_attention_forward.3} parent=39 // pred_check_branch
          %471 = sbr.rel (%p469) target = $region44
        $region43: #{multihead_attention_forward.3} parent=39 // pred_region
          %v472 = vld [vmem:[%s4] sm:$0x1]
          %v474 = vperm.slane %v472, 0
          %v476 = vadd.f32 %v466, %v474
          %vm477 = vcmask 261120
          %478 = vst.msk [vmem:[%s329] sm:$0xff] %vm477, %v476
        $region44: #{multihead_attention_forward.3} parent=39 // pred_fallthru
          _
        %p479 = scmp.ne.s32.totalorder %s29, 0
        // Predicated region
        $region45: #{multihead_attention_forward.3} parent=39 // pred_check
          %p480 = pneg %p479
        $region46: #{multihead_attention_forward.3} parent=39 // pred_check_branch
          %482 = sbr.rel (%p480) target = $region48
        $region47: #{multihead_attention_forward.3} parent=39 // pred_region
          %v483 = vld [vmem:[%s329] sm:$0xff]
          %v484 = vadd.f32 %v483, %v466
          %vm485 = vcmask 261120
          %486 = vst.msk [vmem:[%s329] sm:$0xff] %vm485, %v484
        $region48: #{multihead_attention_forward.3} parent=39 // pred_fallthru
          _
        %s487 = sand.u32 %s175, 1
        %s488 = scalar_lea.sflag [#allocation3], %s487
        %s489 = sand.u32 %s175, 1
        %s490 = smul.addr %s489, 8
        %s491 = scalar_lea.vmem [#allocation2], %s490
        %s492 = sand.u32 %s203, 1
        %s493 = scalar_lea.sflag [#allocation5], %s492
        %s494 = sand.u32 %s203, 1
        %s495 = smul.addr %s494, 8
        %s496 = scalar_lea.vmem [#allocation4], %s495
        // Predicated region
        $region49: #{multihead_attention_forward.3} parent=39 // pred_check
          %p497 = pneg %p185
        $region50: #{multihead_attention_forward.3} parent=39 // pred_check_branch
          %499 = sbr.rel (%p497) target = $region52
        $region51: #{multihead_attention_forward.3} parent=39 // pred_region
          %501 = vsyncadd %s488, 0
          %s502 = smul.addr %s28, 8
          %s503 = scalar_lea.hbm %s5, %s502
          %s505 = sshll.u32 %s491, 4
          %s506 = int_to_ptr.vmem [resolvable:$true] %s505
          %s507 = sshll.u32 %s503, 4
          %s508 = int_to_ptr.hbm [resolvable:$true] %s507
          %510 = dma.vmem_to_hbm [thread:$0]  %s506, 128, %s508, %s488
        $region52: #{multihead_attention_forward.3} parent=39 // pred_fallthru
          _
        // Predicated region
        $region53: #{multihead_attention_forward.3} parent=39 // pred_check
          %p511 = pneg %p213
        $region54: #{multihead_attention_forward.3} parent=39 // pred_check_branch
          %513 = sbr.rel (%p511) target = $region56
        $region55: #{multihead_attention_forward.3} parent=39 // pred_region
          %515 = vsyncadd %s493, 0
          %s516 = smul.addr %s28, 4
          %s517 = sadd.s32 %s29, %s516
          %s518 = smul.addr %s517, 8
          %s519 = scalar_lea.hbm %s6, %s518
          %s521 = sshll.u32 %s496, 4
          %s522 = int_to_ptr.vmem [resolvable:$true] %s521
          %s523 = sshll.u32 %s519, 4
          %s524 = int_to_ptr.hbm [resolvable:$true] %s523
          %526 = dma.vmem_to_hbm [thread:$0]  %s522, 128, %s524, %s493
        $region56: #{multihead_attention_forward.3} parent=39 // pred_fallthru
          _
      $region40: #{multihead_attention_forward.3} parent=5 // pred_fallthru
        _
      %p527 = scmp.le.s32.totalorder 2, %s19
      // Predicated region
      $region57: #{multihead_attention_forward.3} parent=5 // pred_check
        %p528 = pneg %p527
      $region58: #{multihead_attention_forward.3} parent=5 // pred_check_branch
        %530 = sbr.rel (%p528) target = $region60
      $region59: #{multihead_attention_forward.3} parent=5 // pred_region
        %s531 = ssub.s32 %s19, 2
        // Predicated region
        $region61: #{multihead_attention_forward.3} parent=59 // pred_check
          %p532 = pneg %p191
        $region62: #{multihead_attention_forward.3} parent=59 // pred_check_branch
          %534 = sbr.rel (%p532) target = $region64
        $region63: #{multihead_attention_forward.3} parent=59 // pred_region
          %s535 = sand.u32 %s176, 1
          %s536 = scalar_lea.sflag [#allocation3], %s535
          %s537 = sand.u32 %s176, 1
          %s538 = smul.addr %s537, 8
          %s539 = scalar_lea.vmem [#allocation2], %s538
          %541 = dma.done %s536, 128
        $region64: #{multihead_attention_forward.3} parent=59 // pred_fallthru
          _
        // Predicated region
        $region65: #{multihead_attention_forward.3} parent=59 // pred_check
          %p542 = pneg %p219
        $region66: #{multihead_attention_forward.3} parent=59 // pred_check_branch
          %544 = sbr.rel (%p542) target = $region68
        $region67: #{multihead_attention_forward.3} parent=59 // pred_region
          %s545 = sand.u32 %s204, 1
          %s546 = scalar_lea.sflag [#allocation5], %s545
          %s547 = sand.u32 %s204, 1
          %s548 = smul.addr %s547, 8
          %s549 = scalar_lea.vmem [#allocation4], %s548
          %551 = dma.done %s546, 128
        $region68: #{multihead_attention_forward.3} parent=59 // pred_fallthru
          _
      $region60: #{multihead_attention_forward.3} parent=5 // pred_fallthru
        _
    $region6: #{multihead_attention_forward.3} parent=1 // loop_footer
      %s23 = sadd.s32 1, %s19
    $region7: #{multihead_attention_forward.3} parent=1 // loop_footer_branch
      %18 = sbr.rel target = $region3
    $region8: #{multihead_attention_forward.3} parent=1 // loop_exit
      _
    %552 = vsyncpa [#allocation3], 1
    %s553 = scalar_lea.sflag [#allocation3], 1
    %554 = vsyncpa %s553, 1
    %555 = vsyncpa [#allocation5], 1
    %s556 = scalar_lea.sflag [#allocation5], 1
    %557 = vsyncpa %s556, 1

</llo_original>
